<compile_context>
chip_gen: v7x
topology: tpu7x:2x2x1
jax: 0.10.0
libtpu: 0.0.40
codegen_flags: <defaults>
</compile_context>

<pallas_src>
import functools

import jax
import jax.numpy as jnp
from jax.experimental import pallas as pl
from jax.experimental.pallas import tpu as pltpu


def _make_pe_table(max_len: int, embed_size: int) -> jnp.ndarray:
    """Deterministic sinusoidal PE table, identical math to the PyTorch __init__."""
    position = jnp.arange(max_len, dtype=jnp.float32)[:, None]            # (L, 1)
    div_term = jnp.exp(
        jnp.arange(0, embed_size, 2, dtype=jnp.float32)
        * (-jnp.log(jnp.float32(10000.0)) / embed_size)
    )                                                                     # (ceil(E/2),)
    pe = jnp.zeros((max_len, embed_size), dtype=jnp.float32)
    pe = pe.at[:, 0::2].set(jnp.sin(position * div_term))
    if embed_size % 2 == 1:
        pe = pe.at[:, 1::2].set(jnp.cos(position * div_term[:-1]))
    else:
        pe = pe.at[:, 1::2].set(jnp.cos(position * div_term))
    return pe                                                             # (L, E)


def _pick_tile(total: int, candidates) -> int:
    """Largest candidate that exactly divides `total`; else the full extent."""
    for c in candidates:
        if c <= total and total % c == 0:
            return c
    return total


def _mix32(x):
    # lowbias32 finalizer — counter-based PRNG that lowers on the TPU VPU and in
    # interpret mode (replaces pltpu.prng_* which has no CPU lowering).
    x = (x ^ (x >> 16)) * jnp.uint32(0x7FEB352D)
    x = (x ^ (x >> 15)) * jnp.uint32(0x846CA68B)
    x = x ^ (x >> 16)
    return x


def _pe_add_kernel(x_ref, pe_ref, o_ref):
    # x_ref/o_ref: (row_tile, col_tile); pe_ref: (1, col_tile) broadcast over rows.
    o_ref[...] = x_ref[...] + pe_ref[...]


def _pe_add_dropout_kernel(seed_ref, x_ref, pe_ref, o_ref, *,
                           p: float, row_tile: int, col_tile: int, n_cols: int):
    y = x_ref[...] + pe_ref[...]

    # Inverted dropout (same semantics as torch.nn.Dropout in training mode).
    # Mask = hash(seed, global element index); seed/index cover both grid axes
    # so different tiles never reuse the same random stream.
    c = pl.program_id(0)                       # column (S*E) tile index
    r = pl.program_id(1)                       # row (batch) tile index
    rows = jax.lax.broadcasted_iota(jnp.int32, y.shape, 0) + r * row_tile
    cols = jax.lax.broadcasted_iota(jnp.int32, y.shape, 1) + c * col_tile
    idx = rows.astype(jnp.uint32) * jnp.uint32(n_cols) + cols.astype(jnp.uint32)
    seed = seed_ref[0].astype(jnp.uint32) * jnp.uint32(0x9E3779B9)
    bits = _mix32(idx ^ seed)

    # Integer-domain keep test: top 24 bits vs precomputed threshold.
    bits24 = (bits >> 8).astype(jnp.int32)                     # in [0, 2^24)
    thresh = jnp.int32(min(int(round(p * (1 << 24))), (1 << 24) - 1))
    keep = bits24 >= thresh
    scale = jnp.asarray(1.0 / (1.0 - p), dtype=y.dtype)
    o_ref[...] = jnp.where(keep, y * scale, jnp.zeros_like(y))


def positional_encoding(x, pe_table, *, dropout_p: float = 0.1,
                        training: bool = False, seed: int = 0):
    """x: (B, S, E). Returns dropout(x + pe[:, :S]) computed in a Pallas TPU kernel."""
    B, S, E = x.shape
    n_cols = S * E

    # Lane-dense retiling: fold (S, E) into the last dim so every store is a
    # full-lane vst even when E < 128.  PE broadcasts along the batch (row) dim.
    x2 = x.reshape(B, n_cols)
    pe2 = pe_table[:S].reshape(1, n_cols).astype(x.dtype)      # add in x.dtype

    # Bounded VMEM footprint on all generations (v5e 16 MiB scoped, v7x 64 MiB
    # physical): col tile <= 4096, row tile <= 512, multiples of (8, 128) or
    # full extent.
    col_tile = _pick_tile(n_cols, (4096, 2048, 1024, 512, 256, 128))
    row_tile = _pick_tile(B, (512, 256, 128, 64, 32, 16, 8))
    # Grid order (cols outer, rows inner): the PE block index depends only on
    # the outer axis, so the same PE tile is not re-DMA'd for every batch step.
    grid = (n_cols // col_tile, B // row_tile)

    dtype_bytes = jnp.dtype(x.dtype).itemsize
    cost = pl.CostEstimate(
        flops=B * n_cols,
        transcendentals=0,
        bytes_accessed=2 * B * n_cols * dtype_bytes + n_cols * dtype_bytes,
    )
    cparams = pltpu.CompilerParams(
        dimension_semantics=("parallel", "parallel"))          # megacore-friendly

    apply_dropout = training and dropout_p > 0.0
    if not apply_dropout:
        # Eval / p==0 path: no scalar prefetch, no dead seed argument.
        out2 = pl.pallas_call(
            _pe_add_kernel,
            out_shape=jax.ShapeDtypeStruct((B, n_cols), x.dtype),
            grid_spec=pl.GridSpec(
                grid=grid,
                in_specs=[
                    pl.BlockSpec((row_tile, col_tile), lambda c, r: (r, c)),
                    pl.BlockSpec((1, col_tile), lambda c, r: (0, c)),
                ],
                out_specs=pl.BlockSpec((row_tile, col_tile), lambda c, r: (r, c)),
            ),
            compiler_params=cparams,
            cost_estimate=cost,
        )(x2, pe2)
    else:
        kernel = functools.partial(
            _pe_add_dropout_kernel, p=float(dropout_p),
            row_tile=row_tile, col_tile=col_tile, n_cols=n_cols)
        out2 = pl.pallas_call(
            kernel,
            out_shape=jax.ShapeDtypeStruct((B, n_cols), x.dtype),
            grid_spec=pltpu.PrefetchScalarGridSpec(
                num_scalar_prefetch=1,                         # seed lives in SMEM
                grid=grid,
                in_specs=[
                    pl.BlockSpec((row_tile, col_tile), lambda c, r, s: (r, c)),
                    pl.BlockSpec((1, col_tile), lambda c, r, s: (0, c)),
                ],
                out_specs=pl.BlockSpec((row_tile, col_tile), lambda c, r, s: (r, c)),
            ),
            compiler_params=cparams,
            cost_estimate=cost,
        )(jnp.array([seed], dtype=jnp.int32), x2, pe2)

    return out2.reshape(B, S, E)


if __name__ == "__main__":
    B, S, E = 2, 8, 32
    MAX_LEN = 64

    key = jax.random.PRNGKey(0)
    x = jax.random.normal(key, (B, S, E), dtype=jnp.float32)
    pe_table = _make_pe_table(MAX_LEN, E)

    ref = x + pe_table[:S][None]

    # Eval-mode forward (dropout = identity): deterministic, check against reference.
    out_eval = positional_encoding(x, pe_table, dropout_p=0.1, training=False)
    out_eval = jax.block_until_ready(out_eval)
    assert out_eval.shape == (B, S, E) and out_eval.dtype == x.dtype
    assert jnp.allclose(out_eval, ref, atol=1e-6), "eval-mode mismatch"

    # Training-mode forward: surviving elements must equal (x + pe) / (1 - p),
    # dropped elements are exactly 0, and the drop fraction must be plausible.
    p = 0.1
    out_train = positional_encoding(x, pe_table, dropout_p=p, training=True, seed=123)
    out_train = jax.block_until_ready(out_train)
    assert out_train.shape == (B, S, E) and out_train.dtype == x.dtype
    scaled_ref = ref / (1.0 - p)
    ok = (out_train == 0) | (jnp.abs(out_train - scaled_ref) < 1e-4)
    assert bool(jnp.all(ok)), "training-mode value mismatch"
    drop_frac = float(jnp.mean((out_train == 0).astype(jnp.float32)))
    assert 0.0 <= drop_frac <= 0.35, f"implausible drop fraction {drop_frac}"

    print("KERNEL_OK")
</pallas_src>

<mosaic_0001>
module attributes {stable_mosaic.version = 11 : i64} {
  func.func @_pe_add_kernel(%arg0: i32, %arg1: i32, %arg2: memref<2x256xf32, #tpu.memory_space<vmem>>, %arg3: memref<1x256xf32, #tpu.memory_space<vmem>>, %arg4: memref<2x256xf32, #tpu.memory_space<vmem>>) attributes {dimension_semantics = [#tpu.dimension_semantics<parallel>, #tpu.dimension_semantics<parallel>], iteration_bounds = array<i64: 1, 1>, scalar_prefetch = 0 : i64, scratch_operands = 0 : i64, tpu.core_type = #tpu.core_type<tc>, window_params = [{transform_indices = @transform_0, window_bounds = array<i64: 2, 256>}, {transform_indices = @transform_1, window_bounds = array<i64: 1, 256>}, {transform_indices = @transform_2, window_bounds = array<i64: 2, 256>}]} {
    %c0 = arith.constant 0 : index
    %c0_0 = arith.constant 0 : index
    %0 = vector.load %arg2[%c0, %c0_0] : memref<2x256xf32, #tpu.memory_space<vmem>>, vector<2x256xf32>
    %c0_1 = arith.constant 0 : index
    %c0_2 = arith.constant 0 : index
    %1 = vector.load %arg3[%c0_1, %c0_2] : memref<1x256xf32, #tpu.memory_space<vmem>>, vector<1x256xf32>
    %2 = vector.broadcast %1 : vector<1x256xf32> to vector<2x256xf32>
    %3 = arith.addf %0, %2 : vector<2x256xf32>
    %c0_3 = arith.constant 0 : index
    %c0_4 = arith.constant 0 : index
    %4 = vector.load %arg4[%c0_3, %c0_4] : memref<2x256xf32, #tpu.memory_space<vmem>>, vector<2x256xf32>
    tpu.vector_store %arg4[%c0_3, %c0_4], %3 {strides = array<i32>} : memref<2x256xf32, #tpu.memory_space<vmem>>, vector<2x256xf32>,
    return
  }
  func.func @transform_0(%arg0: i32, %arg1: i32) -> (i32, i32) {
    %c0_i32 = arith.constant 0 : i32
    return %arg1, %arg0 : i32, i32
  }
  func.func @transform_1(%arg0: i32, %arg1: i32) -> (i32, i32) {
    %c0_i32 = arith.constant 0 : i32
    %c0_i32_0 = arith.constant 0 : i32
    return %c0_i32, %arg0 : i32, i32
  }
  func.func @transform_2(%arg0: i32, %arg1: i32) -> (i32, i32) {
    %c0_i32 = arith.constant 0 : i32
    return %arg1, %arg0 : i32, i32
  }
}

</mosaic_0001>

<llo_original>
// kernel: tpu_custom_call.1
$region0: #{tpu_custom_call.1}
  #allocation0 [shape = 'u32[]', space=smem, size = 0x4, offset = 0x4, fixed_abs, tag = 'smem constant byte address 0x4 - core index']
  #allocation1 [shape = 'u32[144,128]{1,0:T(1,128)}', space=vmem, size = 0x12000, scoped, tag = 'internal scratch']
  %s0 = inlined_call_operand.hbm [shape: f32[2,256], index: 0, kind: input, shape index: {}]
  %s1 = inlined_call_operand.vmem [shape: f32[1,256], index: 1, kind: input, shape index: {}]
  %s2 = inlined_call_operand.hbm [shape: f32[2,256], index: 2, kind: output, shape index: {}]
  %s3 = sld [smem:[#allocation0]]
  $region22: #{tpu_custom_call.1} parent=0
    _
  %s5 = ssub.s32 1, %s3
  %s6 = scalar_select 0, %s5, %s3
  $region1: #{tpu_custom_call.1} parent=0
    #allocation2 [shape = 'u8[2048]{0}', space=vmem, size = 0x800, scoped, tag = 'input window, operand 0, single buffered']
    #allocation3 [shape = 's32[1]{0}', space=sflag, size = 0x4, scoped, tag = 'scoped memory for tpu_custom_call.1']
    #allocation4 [shape = 's32[1]{0}', space=sflag, size = 0x4, scoped, tag = 'scoped memory for tpu_custom_call.1']
    #allocation5 [shape = 'u8[2048]{0}', space=vmem, size = 0x800, scoped, tag = 'output window, operand 0, single buffered']
    %7 = vsyncpa [#allocation3], 0
    %8 = vsyncpa [#allocation4], 0
    // Predicated region
    $region2: #{tpu_custom_call.1} parent=1 // pred_check
      _
    $region3: #{tpu_custom_call.1} parent=1 // pred_check_branch
      %10 = sbr.rel (0) target = $region5
    $region4: #{tpu_custom_call.1} parent=1 // pred_region
      %s12 = ssub.s32 64, 64
      %13 = vsyncadd [#allocation3], %s12
      %s15 = sshll.u32 [#allocation2], 4
      %s16 = int_to_ptr.vmem [resolvable:$true] %s15
      %18 = dma.hbm_to_vmem [thread:$0]  %s0, 64, %s16, [#allocation3]
    $region5: #{tpu_custom_call.1} parent=1 // pred_fallthru
      _
    // Predicated region
    $region6: #{tpu_custom_call.1} parent=1 // pred_check
      _
    $region7: #{tpu_custom_call.1} parent=1 // pred_check_branch
      %20 = sbr.rel (0) target = $region9
    $region8: #{tpu_custom_call.1} parent=1 // pred_region
      _
    $region9: #{tpu_custom_call.1} parent=1 // pred_fallthru
      _
    // Predicated region
    $region10: #{tpu_custom_call.1} parent=1 // pred_check
      _
    $region11: #{tpu_custom_call.1} parent=1 // pred_check_branch
      %22 = sbr.rel (0) target = $region13
    $region12: #{tpu_custom_call.1} parent=1 // pred_region
      %23 = dma.done [#allocation3], 64
    $region13: #{tpu_custom_call.1} parent=1 // pred_fallthru
      _
    %v24 = vld [vmem:[#allocation2] sm:$0xf]
    %v25 = vld [vmem:[%s1] sm:$0x3]
    %v27 = vlaneseq
    %v28 = vshrl.u32 %v27, 7
    %v29 = vsub.s32 0, %v28
    %v30 = vrot.slane %v25, %v29
    %v31 = vlaneseq
    %v32 = vshrl.u32 %v31, 7
    %v33 = vsub.s32 1, %v32
    %v34 = vrot.slane %v25, %v33
    %v35 = vcombine.low %v30, %v34
    %v37 = vunpack.c.l.s4 1983009808
    %v38 = vunpack.c.0.s8 %v37
    %v39 = vlaneseq
    %v40 = vshrl.u32 %v39, 7
    %v41 = vsub.s32 %v38, %v40
    %v42 = vrot.slane %v35, %v41
    %v44 = vadd.f32 %v24, %v42
    %45 = vst [vmem:[#allocation5] sm:$0xf] %v44
    // Predicated region
    $region14: #{tpu_custom_call.1} parent=1 // pred_check
      _
    $region15: #{tpu_custom_call.1} parent=1 // pred_check_branch
      %47 = sbr.rel (0) target = $region17
    $region16: #{tpu_custom_call.1} parent=1 // pred_region
      %s49 = ssub.s32 64, 64
      %50 = vsyncadd [#allocation4], %s49
      %s52 = sshll.u32 [#allocation5], 4
      %s53 = int_to_ptr.vmem [resolvable:$true] %s52
      %55 = dma.vmem_to_hbm [thread:$0]  %s53, 64, %s2, [#allocation4]
    $region17: #{tpu_custom_call.1} parent=1 // pred_fallthru
      _
    // Predicated region
    $region18: #{tpu_custom_call.1} parent=1 // pred_check
      _
    $region19: #{tpu_custom_call.1} parent=1 // pred_check_branch
      %57 = sbr.rel (0) target = $region21
    $region20: #{tpu_custom_call.1} parent=1 // pred_region
      %58 = dma.done [#allocation4], 64
    $region21: #{tpu_custom_call.1} parent=1 // pred_fallthru
      _
    %59 = vsyncpa [#allocation3], 1
    %60 = vsyncpa [#allocation4], 1

</llo_original>
